<compile_context>
chip_gen: v6e
topology: v6e:2x2x1
jax: 0.10.0
libtpu: 0.0.40
codegen_flags: <defaults>
</compile_context>

<pallas_src>
import functools

import jax
import jax.numpy as jnp
from jax.experimental import pallas as pl
from jax.experimental.pallas import tpu as pltpu

LANE = 128        # vreg lane width
SUB = 8           # vreg sublane count; partial-sum rows per grid step
TILE_ROWS = 512   # rows per grid step: (512,128) f32 block = 256 KiB / operand


def _focal_elementwise(x, t, alpha, gamma):
    """Elementwise sigmoid focal loss in f32 (torchvision semantics)."""
    # e = exp(-|x|) is reused for both the stable BCE and the sigmoid.
    e = jnp.exp(-jnp.abs(x))
    ce = jnp.maximum(x, 0.0) - x * t + jnp.log1p(e)
    inv = 1.0 / (1.0 + e)
    p = jnp.where(x >= 0.0, inv, e * inv)           # == sigmoid(x)
    p_t = p * t + (1.0 - p) * (1.0 - t)
    one_minus_pt = 1.0 - p_t

    g = float(gamma)
    if g == int(g) and 0 <= int(g) <= 8:
        # Compile-time integer gamma: repeated multiply (VPU), no pow on EUP.
        gi = int(g)
        if gi == 0:
            mod = jnp.ones_like(one_minus_pt)
        else:
            mod = one_minus_pt
            for _ in range(gi - 1):
                mod = mod * one_minus_pt
    else:
        mod = one_minus_pt ** g

    loss = ce * mod
    if alpha >= 0:
        alpha_t = alpha * t + (1.0 - alpha) * (1.0 - t)
        loss = alpha_t * loss
    return loss


def _tail_mask(tile_rows, n_elems):
    """Validity mask for the current (tile_rows, LANE) block.

    n_elems is a Python int at trace time; full_rows/rem are Python ints,
    so no in-kernel 32-bit index multiply (no overflow risk).
    """
    full_rows, rem = divmod(n_elems, LANE)
    base = pl.program_id(0) * tile_rows
    row = jax.lax.broadcasted_iota(jnp.int32, (tile_rows, LANE), 0) + base
    if rem == 0:
        return row < full_rows
    col = jax.lax.broadcasted_iota(jnp.int32, (tile_rows, LANE), 1)
    return (row < full_rows) | ((row == full_rows) & (col < rem))


def _focal_sum_kernel(x_ref, t_ref, psum_ref, *, alpha, gamma, n_elems):
    """Reduction variant: emits only an (8, 128) partial sum per grid step."""
    x = x_ref[...].astype(jnp.float32)
    t = t_ref[...].astype(jnp.float32)
    tile_rows = x.shape[0]

    loss = _focal_elementwise(x, t, alpha, gamma)
    loss = jnp.where(_tail_mask(tile_rows, n_elems), loss, 0.0)

    # (tile_rows, 128) -> (tile_rows//8, 8, 128) -> sum over tile groups.
    psum_ref[...] = loss.reshape(tile_rows // SUB, SUB, LANE).sum(axis=0)


def _focal_none_kernel(x_ref, t_ref, loss_ref, *, alpha, gamma, n_elems):
    """'none' reduction variant: emits the full elementwise loss."""
    x = x_ref[...].astype(jnp.float32)
    t = t_ref[...].astype(jnp.float32)
    tile_rows = x.shape[0]

    loss = _focal_elementwise(x, t, alpha, gamma)
    loss_ref[...] = jnp.where(_tail_mask(tile_rows, n_elems), loss, 0.0)


def sigmoid_focal_loss(preds, targets, alpha=0.25, gamma=2.0, reduction="mean"):
    """Pallas implementation of torchvision.ops.sigmoid_focal_loss."""
    orig_shape = preds.shape
    n_elems = preds.size

    x = preds.reshape(-1)
    t = targets.reshape(-1)
    # Keep floating inputs (f32/bf16/f16) in their own dtype through the DMA;
    # only non-float targets/preds are converted (matches targets.float()).
    if not jnp.issubdtype(x.dtype, jnp.floating):
        x = x.astype(jnp.float32)
    if not jnp.issubdtype(t.dtype, jnp.floating):
        t = t.astype(jnp.float32)

    # Pad only to a multiple of one (8,128) vreg tile so the 2-D view and the
    # block divisibility constraint hold. For typical (N,1,H,W) image shapes
    # this pad is 0 and no copy is made; the kernel masks any padded lanes.
    block_elems = SUB * LANE
    pad = (-n_elems) % block_elems
    if pad:
        x = jnp.pad(x, (0, pad))
        t = jnp.pad(t, (0, pad))
    rows = (n_elems + pad) // LANE            # multiple of SUB
    x2 = x.reshape(rows, LANE)
    t2 = t.reshape(rows, LANE)

    tile_rows = min(TILE_ROWS, rows)          # multiple of 8, <= array rows
    n_tiles = pl.cdiv(rows, tile_rows)

    in_specs = [
        pl.BlockSpec((tile_rows, LANE), lambda i: (i, 0)),
        pl.BlockSpec((tile_rows, LANE), lambda i: (i, 0)),
    ]

    if reduction in ("mean", "sum"):
        kernel = functools.partial(
            _focal_sum_kernel, alpha=alpha, gamma=gamma, n_elems=n_elems)
        partials = pl.pallas_call(
            kernel,
            out_shape=jax.ShapeDtypeStruct((n_tiles * SUB, LANE), jnp.float32),
            grid_spec=pltpu.PrefetchScalarGridSpec(
                num_scalar_prefetch=0,
                grid=(n_tiles,),
                in_specs=in_specs,
                out_specs=pl.BlockSpec((SUB, LANE), lambda i: (i, 0)),
            ),
            compiler_params=pltpu.CompilerParams(
                dimension_semantics=("parallel",),
            ),
        )(x2, t2)
        total = jnp.sum(partials)
        if reduction == "mean":
            return total / jnp.float32(n_elems)
        return total

    elif reduction == "none":
        kernel = functools.partial(
            _focal_none_kernel, alpha=alpha, gamma=gamma, n_elems=n_elems)
        loss2 = pl.pallas_call(
            kernel,
            out_shape=jax.ShapeDtypeStruct((rows, LANE), jnp.float32),
            grid_spec=pltpu.PrefetchScalarGridSpec(
                num_scalar_prefetch=0,
                grid=(n_tiles,),
                in_specs=in_specs,
                out_specs=pl.BlockSpec((tile_rows, LANE), lambda i: (i, 0)),
            ),
            compiler_params=pltpu.CompilerParams(
                dimension_semantics=("parallel",),
            ),
        )(x2, t2)
        return loss2.reshape(-1)[:n_elems].reshape(orig_shape)

    else:
        raise ValueError(f"unknown reduction {reduction!r}")


class FocalLoss:
    """JAX/Pallas port of the PyTorch FocalLoss wrapper."""

    def __init__(self, alpha=0.25, gamma=2.0, reduction="mean"):
        self.alpha = alpha
        self.gamma = gamma
        self.reduction = reduction

    def __call__(self, preds, targets):
        return sigmoid_focal_loss(
            preds, targets,
            alpha=self.alpha, gamma=self.gamma, reduction=self.reduction,
        )


def _reference_focal_loss(preds, targets, alpha=0.25, gamma=2.0, reduction="mean"):
    x = preds.astype(jnp.float32)
    t = targets.astype(jnp.float32)
    p = jax.nn.sigmoid(x)
    ce = jnp.maximum(x, 0.0) - x * t + jnp.log1p(jnp.exp(-jnp.abs(x)))
    p_t = p * t + (1.0 - p) * (1.0 - t)
    loss = ce * (1.0 - p_t) ** gamma
    alpha_t = alpha * t + (1.0 - alpha) * (1.0 - t)
    loss = alpha_t * loss
    if reduction == "mean":
        return loss.mean()
    if reduction == "sum":
        return loss.sum()
    return loss


if __name__ == "__main__":
    key = jax.random.PRNGKey(0)
    k1, k2 = jax.random.split(key)

    N, C, H, W = 2, 1, 16, 16  # matches module's documented (N, 1, H, W)
    preds = jax.random.normal(k1, (N, C, H, W), dtype=jnp.float32)
    targets = (jax.random.uniform(k2, (N, C, H, W)) > 0.5).astype(jnp.float32)

    # default 'mean' path (reduction-only kernel)
    loss_fn = FocalLoss(alpha=0.25, gamma=2.0, reduction="mean")
    out_mean = jax.block_until_ready(loss_fn(preds, targets))
    ref_mean = _reference_focal_loss(preds, targets, reduction="mean")
    assert jnp.allclose(out_mean, ref_mean, rtol=1e-4, atol=1e-6), (out_mean, ref_mean)

    # 'sum' path
    out_sum = jax.block_until_ready(
        sigmoid_focal_loss(preds, targets, reduction="sum"))
    ref_sum = _reference_focal_loss(preds, targets, reduction="sum")
    assert jnp.allclose(out_sum, ref_sum, rtol=1e-4, atol=1e-5), (out_sum, ref_sum)

    # 'none' path (elementwise kernel)
    out_none = jax.block_until_ready(
        sigmoid_focal_loss(preds, targets, reduction="none"))
    ref_none = _reference_focal_loss(preds, targets, reduction="none")
    assert out_none.shape == preds.shape
    assert jnp.allclose(out_none, ref_none, rtol=1e-4, atol=1e-6)

    print("KERNEL_OK")
</pallas_src>

<mosaic_0001>
module attributes {stable_mosaic.version = 11 : i64} {
  func.func @_focal_sum_kernel(%arg0: i32, %arg1: memref<8x128xf32, #tpu.memory_space<vmem>>, %arg2: memref<8x128xf32, #tpu.memory_space<vmem>>, %arg3: memref<8x128xf32, #tpu.memory_space<vmem>>) attributes {dimension_semantics = [#tpu.dimension_semantics<parallel>], iteration_bounds = array<i64: 1>, scalar_prefetch = 0 : i64, scratch_operands = 0 : i64, tpu.core_type = #tpu.core_type<tc>, window_params = [{transform_indices = @transform_0, window_bounds = array<i64: 8, 128>}, {transform_indices = @transform_1, window_bounds = array<i64: 8, 128>}, {transform_indices = @transform_2, window_bounds = array<i64: 8, 128>}]} {
    %c0 = arith.constant 0 : index
    %c0_0 = arith.constant 0 : index
    %0 = vector.load %arg1[%c0, %c0_0] : memref<8x128xf32, #tpu.memory_space<vmem>>, vector<8x128xf32>
    %c0_1 = arith.constant 0 : index
    %c0_2 = arith.constant 0 : index
    %1 = vector.load %arg2[%c0_1, %c0_2] : memref<8x128xf32, #tpu.memory_space<vmem>>, vector<8x128xf32>
    %2 = math.absf %0 : vector<8x128xf32>
    %cst = arith.constant 0.000000e+00 : f32
    %3 = vector.broadcast %cst : f32 to vector<8x128xf32>
    %4 = arith.subf %3, %2 : vector<8x128xf32>
    %5 = math.exp %4 : vector<8x128xf32>
    %cst_3 = arith.constant 0.000000e+00 : f32
    %6 = vector.broadcast %cst_3 : f32 to vector<8x128xf32>
    %7 = arith.maximumf %0, %6 : vector<8x128xf32>
    %8 = arith.mulf %0, %1 : vector<8x128xf32>
    %9 = arith.subf %7, %8 : vector<8x128xf32>
    %10 = math.log1p %5 : vector<8x128xf32>
    %11 = arith.addf %9, %10 : vector<8x128xf32>
    %cst_4 = arith.constant 1.000000e+00 : f32
    %12 = vector.broadcast %cst_4 : f32 to vector<8x128xf32>
    %13 = arith.addf %12, %5 : vector<8x128xf32>
    %cst_5 = arith.constant 1.000000e+00 : f32
    %14 = vector.broadcast %cst_5 : f32 to vector<8x128xf32>
    %15 = arith.divf %14, %13 : vector<8x128xf32>
    %cst_6 = arith.constant 0.000000e+00 : f32
    %16 = vector.broadcast %cst_6 : f32 to vector<8x128xf32>
    %17 = arith.cmpf oge, %0, %16 : vector<8x128xf32>
    %18 = arith.mulf %5, %15 : vector<8x128xf32>
    %19 = arith.select %17, %15, %18 : vector<8x128xi1>, vector<8x128xf32>
    %20 = arith.mulf %19, %1 : vector<8x128xf32>
    %cst_7 = arith.constant 1.000000e+00 : f32
    %21 = vector.broadcast %cst_7 : f32 to vector<8x128xf32>
    %22 = arith.subf %21, %19 : vector<8x128xf32>
    %cst_8 = arith.constant 1.000000e+00 : f32
    %23 = vector.broadcast %cst_8 : f32 to vector<8x128xf32>
    %24 = arith.subf %23, %1 : vector<8x128xf32>
    %25 = arith.mulf %22, %24 : vector<8x128xf32>
    %26 = arith.addf %20, %25 : vector<8x128xf32>
    %cst_9 = arith.constant 1.000000e+00 : f32
    %27 = vector.broadcast %cst_9 : f32 to vector<8x128xf32>
    %28 = arith.subf %27, %26 : vector<8x128xf32>
    %29 = arith.mulf %28, %28 : vector<8x128xf32>
    %30 = arith.mulf %11, %29 : vector<8x128xf32>
    %cst_10 = arith.constant 2.500000e-01 : f32
    %31 = vector.broadcast %cst_10 : f32 to vector<8x128xf32>
    %32 = arith.mulf %31, %1 : vector<8x128xf32>
    %cst_11 = arith.constant 1.000000e+00 : f32
    %33 = vector.broadcast %cst_11 : f32 to vector<8x128xf32>
    %34 = arith.subf %33, %1 : vector<8x128xf32>
    %cst_12 = arith.constant 7.500000e-01 : f32
    %35 = vector.broadcast %cst_12 : f32 to vector<8x128xf32>
    %36 = arith.mulf %35, %34 : vector<8x128xf32>
    %37 = arith.addf %32, %36 : vector<8x128xf32>
    %38 = arith.mulf %37, %30 : vector<8x128xf32>
    %c8_i32 = arith.constant 8 : i32
    %39 = arith.muli %arg0, %c8_i32 : i32
    %40 = tpu.iota {dimensions = array<i32: 0>} : vector<8x128xi32>
    %41 = vector.broadcast %39 : i32 to vector<8x128xi32>
    %42 = arith.addi %40, %41 : vector<8x128xi32>
    %c4_i32 = arith.constant 4 : i32
    %43 = vector.broadcast %c4_i32 : i32 to vector<8x128xi32>
    %44 = arith.cmpi slt, %42, %43 : vector<8x128xi32>
    %cst_13 = arith.constant 0.000000e+00 : f32
    %45 = vector.broadcast %cst_13 : f32 to vector<8x128xf32>
    %46 = arith.select %44, %38, %45 : vector<8x128xi1>, vector<8x128xf32>
    %47 = vector.shape_cast %46 : vector<8x128xf32> to vector<1x8x128xf32>
    %cst_14 = arith.constant dense<0.000000e+00> : vector<8x128xf32>
    %48 = vector.multi_reduction <add>, %47, %cst_14 [0] : vector<1x8x128xf32> to vector<8x128xf32>
    %c0_15 = arith.constant 0 : index
    %c0_16 = arith.constant 0 : index
    %49 = vector.load %arg3[%c0_15, %c0_16] : memref<8x128xf32, #tpu.memory_space<vmem>>, vector<8x128xf32>
    tpu.vector_store %arg3[%c0_15, %c0_16], %48 {strides = array<i32>} : memref<8x128xf32, #tpu.memory_space<vmem>>, vector<8x128xf32>,
    return
  }
  func.func @transform_0(%arg0: i32) -> (i32, i32) {
    %c0_i32 = arith.constant 0 : i32
    %c0_i32_0 = arith.constant 0 : i32
    return %arg0, %c0_i32 : i32, i32
  }
  func.func @transform_1(%arg0: i32) -> (i32, i32) {
    %c0_i32 = arith.constant 0 : i32
    %c0_i32_0 = arith.constant 0 : i32
    return %arg0, %c0_i32 : i32, i32
  }
  func.func @transform_2(%arg0: i32) -> (i32, i32) {
    %c0_i32 = arith.constant 0 : i32
    %c0_i32_0 = arith.constant 0 : i32
    return %arg0, %c0_i32 : i32, i32
  }
}

</mosaic_0001>

<llo_original>
// kernel: tpu_custom_call.1
$region0: #{tpu_custom_call.1}
  #allocation0 [shape = 'u32[]', space=smem, size = 0x4, offset = 0x4, fixed_abs, tag = 'smem constant byte address 0x4 - core index']
  #allocation1 [shape = 'u32[144,128]{1,0:T(1,128)}', space=vmem, size = 0x12000, scoped, tag = 'internal scratch']
  %s0 = inlined_call_operand.hbm [shape: f32[8,128], index: 0, kind: input, shape index: {}]
  %s1 = inlined_call_operand.hbm [shape: f32[8,128], index: 1, kind: input, shape index: {}]
  %s2 = inlined_call_operand.hbm [shape: f32[8,128], index: 2, kind: output, shape index: {}]
  %s3 = sld [smem:[#allocation0]]
  $region26: #{tpu_custom_call.1} parent=0
    _
  %s5 = ssub.s32 1, %s3
  %s6 = scalar_select 0, %s5, %s3
  $region1: #{tpu_custom_call.1} parent=0
    #allocation2 [shape = 'u8[4096]{0}', space=vmem, size = 0x1000, scoped, tag = 'input window, operand 0, single buffered']
    #allocation3 [shape = 's32[1]{0}', space=sflag, size = 0x4, scoped, tag = 'scoped memory for tpu_custom_call.1']
    #allocation4 [shape = 's32[1]{0}', space=sflag, size = 0x4, scoped, tag = 'scoped memory for tpu_custom_call.1']
    #allocation5 [shape = 'u8[4096]{0}', space=vmem, size = 0x1000, scoped, tag = 'input window, operand 1, single buffered']
    #allocation6 [shape = 's32[1]{0}', space=sflag, size = 0x4, scoped, tag = 'scoped memory for tpu_custom_call.1']
    #allocation7 [shape = 'u8[4096]{0}', space=vmem, size = 0x1000, scoped, tag = 'output window, operand 0, single buffered']
    %7 = vsyncpa [#allocation3], 0
    %8 = vsyncpa [#allocation6], 0
    %9 = vsyncpa [#allocation4], 0
    // Predicated region
    $region2: #{tpu_custom_call.1} parent=1 // pred_check
      _
    $region3: #{tpu_custom_call.1} parent=1 // pred_check_branch
      %11 = sbr.rel (0) target = $region5
    $region4: #{tpu_custom_call.1} parent=1 // pred_region
      %s13 = ssub.s32 128, 128
      %14 = vsyncadd [#allocation3], %s13
      %s16 = sshll.u32 [#allocation2], 4
      %s17 = int_to_ptr.vmem [resolvable:$true] %s16
      %19 = dma.hbm_to_vmem [thread:$0]  %s0, 128, %s17, [#allocation3]
    $region5: #{tpu_custom_call.1} parent=1 // pred_fallthru
      _
    // Predicated region
    $region6: #{tpu_custom_call.1} parent=1 // pred_check
      _
    $region7: #{tpu_custom_call.1} parent=1 // pred_check_branch
      %21 = sbr.rel (0) target = $region9
    $region8: #{tpu_custom_call.1} parent=1 // pred_region
      %s23 = ssub.s32 128, 128
      %24 = vsyncadd [#allocation6], %s23
      %s26 = sshll.u32 [#allocation5], 4
      %s27 = int_to_ptr.vmem [resolvable:$true] %s26
      %29 = dma.hbm_to_vmem [thread:$0]  %s1, 128, %s27, [#allocation6]
    $region9: #{tpu_custom_call.1} parent=1 // pred_fallthru
      _
    // Predicated region
    $region10: #{tpu_custom_call.1} parent=1 // pred_check
      _
    $region11: #{tpu_custom_call.1} parent=1 // pred_check_branch
      %31 = sbr.rel (0) target = $region13
    $region12: #{tpu_custom_call.1} parent=1 // pred_region
      %32 = dma.done [#allocation3], 128
    $region13: #{tpu_custom_call.1} parent=1 // pred_fallthru
      _
    // Predicated region
    $region14: #{tpu_custom_call.1} parent=1 // pred_check
      _
    $region15: #{tpu_custom_call.1} parent=1 // pred_check_branch
      %34 = sbr.rel (0) target = $region17
    $region16: #{tpu_custom_call.1} parent=1 // pred_region
      %35 = dma.done [#allocation6], 128
    $region17: #{tpu_custom_call.1} parent=1 // pred_fallthru
      _
    %v36 = vld [vmem:[#allocation2] sm:$0xff]
    %v37 = vld [vmem:[#allocation5] sm:$0xff]
    %v38 = vand.u32 2147483647, %v36
    %v39 = vsub.f32 0.0, %v38
    %v40 = vmul.f32 %v39, 1.442695
    %v41 = vpow.pop %v40
    %v42 = vmax.f32 %v36, 0.0
    %v43 = vmul.f32 %v36, %v37
    %v44 = vsub.f32 %v42, %v43
    %v45 = vadd.f32 %v41, 1.0
    %v46 = vlog2.pop %v45
    %v47 = vmul.f32 %v46, 0.6931472
    %v48 = vmul.f32 -0.5, %v41
    %v49 = vadd.f32 %v48, 1.0
    %v50 = vmul.f32 %v49, %v41
    %v51 = vand.u32 2147483647, %v41
    %vm52 = vcmp.lt.f32.partialorder %v51, 0.0004427343
    %v53 = vsel %vm52, %v50, %v47
    %v54 = vadd.f32 %v44, %v53
    %v55 = vadd.f32 %v41, 1.0
    %v56 = vrcp.pop %v55
    %v57 = vmul.f32 1.0, %v56
    %vm58 = vcmp.ge.f32.partialorder %v36, 0.0
    %v59 = vmul.f32 %v41, %v57
    %v60 = vsel %vm58, %v57, %v59
    %v61 = vmul.f32 %v60, %v37
    %v62 = vsub.f32 1.0, %v60
    %v63 = vsub.f32 1.0, %v37
    %v64 = vmul.f32 %v62, %v63
    %v65 = vadd.f32 %v61, %v64
    %v66 = vsub.f32 1.0, %v65
    %v67 = vmul.f32 %v66, %v66
    %v68 = vmul.f32 %v54, %v67
    %v69 = vmul.f32 %v37, 0.25
    %v70 = vmul.f32 %v63, 0.75
    %v71 = vadd.f32 %v69, %v70
    %v72 = vmul.f32 %v71, %v68
    %s73 = smul.u32 0, 8
    %v74 = vlaneseq
    %v75 = vshrl.u32 %v74, 7
    %v76 = vstv %s73
    %v77 = vadd.s32 %v75, %v76
    %vm78 = vcmp.lt.s32.totalorder %v77, 4
    %v79 = vsel %vm78, %v72, 0.0
    %v80 = vadd.f32 %v79, 0.0
    %81 = vst [vmem:[#allocation7] sm:$0xff] %v80
    // Predicated region
    $region18: #{tpu_custom_call.1} parent=1 // pred_check
      _
    $region19: #{tpu_custom_call.1} parent=1 // pred_check_branch
      %83 = sbr.rel (0) target = $region21
    $region20: #{tpu_custom_call.1} parent=1 // pred_region
      %s85 = ssub.s32 128, 128
      %86 = vsyncadd [#allocation4], %s85
      %s88 = sshll.u32 [#allocation7], 4
      %s89 = int_to_ptr.vmem [resolvable:$true] %s88
      %91 = dma.vmem_to_hbm [thread:$0]  %s89, 128, %s2, [#allocation4]
    $region21: #{tpu_custom_call.1} parent=1 // pred_fallthru
      _
    // Predicated region
    $region22: #{tpu_custom_call.1} parent=1 // pred_check
      _
    $region23: #{tpu_custom_call.1} parent=1 // pred_check_branch
      %93 = sbr.rel (0) target = $region25
    $region24: #{tpu_custom_call.1} parent=1 // pred_region
      %94 = dma.done [#allocation4], 128
    $region25: #{tpu_custom_call.1} parent=1 // pred_fallthru
      _
    %95 = vsyncpa [#allocation3], 1
    %96 = vsyncpa [#allocation6], 1
    %97 = vsyncpa [#allocation4], 1

</llo_original>
